<compile_context>
chip_gen: v7x
topology: tpu7x:2x2x1
jax: 0.10.0
libtpu: 0.0.40
codegen_flags: <defaults>
</compile_context>

<pallas_src>
import jax
import jax.numpy as jnp
from jax import lax
from jax.experimental import pallas as pl
from jax.experimental.pallas import tpu as pltpu

EPS = 1e-8


def _make_kernel(tile_i: int, i_total: int, ragged_i: bool):
    # Contract the lane (last) axis of both operands (flash-attention pattern):
    # (8, TILE_I) x (TILE_O, TILE_I) -> (8, TILE_O), lane-dense along TILE_O.
    dn = (((1,), (1,)), ((), ()))

    def kernel(xn_ref, x_ref, p_ref, o_ref, dot_acc, sq_acc):
        k = pl.program_id(1)

        @pl.when(k == 0)
        def _init():
            dot_acc[...] = jnp.zeros_like(dot_acc)
            sq_acc[...] = jnp.zeros_like(sq_acc)

        p = p_ref[...]                                   # (TILE_O, TILE_I), native dtype
        if ragged_i:
            # Zero out lanes beyond the true I extent on the last K chunk.
            valid = lax.broadcasted_iota(jnp.int32, p.shape, 1) < (i_total - k * tile_i)
            p = jnp.where(valid, p, jnp.zeros_like(p))

        x8 = jnp.broadcast_to(x_ref[...], (8, tile_i))   # (8, TILE_I), native dtype
        ones8 = jnp.ones((8, tile_i), dtype=p.dtype)

        # <param[i], x> on the MXU, f32 accumulation, TILE_O on the lane axis.
        dot_acc[...] += lax.dot_general(x8, p, dn, preferred_element_type=jnp.float32)
        # sum_j param[i,j]^2 via a ones-dot on the MXU (p*p temp is bounded by TILE_I).
        sq_acc[...] += lax.dot_general(ones8, p * p, dn, preferred_element_type=jnp.float32)

        @pl.when(k == pl.num_programs(1) - 1)
        def _finalize():
            xn = xn_ref[0]                               # ||x||, f32 scalar from SMEM
            p_norm = jnp.sqrt(sq_acc[0:1, :])            # (1, TILE_O), lane-dense
            denom = jnp.maximum(p_norm * xn, EPS)        # torch.cosine_similarity clamp
            o_ref[...] = (dot_acc[0:1, :] / denom).astype(o_ref.dtype)

    return kernel


def _vmem_capacity_bytes() -> int:
    try:
        info = pltpu.get_tpu_info()
        cap = getattr(info, "vmem_capacity_bytes", None)
        if cap:
            return int(cap)
    except Exception:
        pass
    return 64 * 1024 * 1024  # conservative: assume a v7x-class 64 MiB part


def _choose_tiles(O: int, I: int, itemsize: int, vmem_cap: int):
    big_vmem = vmem_cap >= 100 * 1024 * 1024          # v5e/v6e (128 MiB) vs v7x (64 MiB)
    budget = (80 if big_vmem else 36) * 1024 * 1024   # double-buffered param + p*p temp

    # Lane (I) tile: keep the whole row when reasonable (no ragged-I masking);
    # otherwise chunk I on a 128 boundary and reduce over the second grid axis.
    tile_i = I if I <= 8192 else 8192

    per_row = tile_i * (2 * itemsize + 4)             # 2x param buffers + f32 p*p temp
    rows = max(8, budget // per_row)

    # v7x megacore: keep >= 8 grid steps along O when O is large enough.
    eighth = (O // 8) // 128 * 128
    if eighth >= 256:
        rows = min(rows, eighth)

    if rows >= O:
        tile_o = O                                    # single full-extent block
    elif rows >= 128:
        tile_o = (rows // 128) * 128
    else:
        tile_o = max(8, (rows // 8) * 8)
    return tile_o, tile_i


def _vmem_limit_bytes(tile_o: int, tile_i: int, itemsize: int, vmem_cap: int) -> int:
    big_vmem = vmem_cap >= 100 * 1024 * 1024
    est = (2 * tile_o * tile_i * itemsize             # param double buffer
           + tile_o * tile_i * 4                      # p*p temporary (f32 worst case)
           + 4 * 8 * tile_i * itemsize                # x row blocks (sublane padded)
           + 6 * 8 * tile_o * 4                       # output blocks + 2 accumulators
           + (2 << 20))                               # headroom for compiler scratch
    cap = (100 if big_vmem else 48) * 1024 * 1024
    return int(min(max(est, 32 * 1024 * 1024), cap))


def mem_forward(param: jax.Array, x: jax.Array, *, tile_o=None, tile_i=None) -> jax.Array:
    """Pallas equivalent of Mem.forward. param: (O, I), x: (I,) -> (O,) float32."""
    O, I = param.shape
    assert x.shape == (I,)

    dtype = param.dtype
    itemsize = jnp.dtype(dtype).itemsize
    vmem_cap = _vmem_capacity_bytes()
    auto_to, auto_ti = _choose_tiles(O, I, itemsize, vmem_cap)

    # Validate / normalize user-supplied tiles (sublane / lane alignment).
    if tile_o is None:
        tile_o = auto_to
    else:
        t = int(tile_o)
        tile_o = O if t >= O else max(8, (t // 8) * 8)
    if tile_i is None:
        tile_i = auto_ti
    else:
        t = int(tile_i)
        tile_i = I if t >= I else max(128, (t // 128) * 128)

    n_o = pl.cdiv(O, tile_o)
    n_k = pl.cdiv(I, tile_i)
    i_pad = n_k * tile_i
    ragged_i = (i_pad != I)

    # ||x|| computed once here (f32), passed to the kernel as an SMEM scalar.
    x_f32 = x.astype(jnp.float32)
    x_norm = jnp.sqrt(jnp.sum(x_f32 * x_f32)).reshape(1)

    # x as a lane-dense row in the param dtype; only this tiny row is padded.
    x_row = x.astype(dtype).reshape(1, I)
    if ragged_i:
        x_row = jnp.pad(x_row, ((0, 0), (0, i_pad - I)))

    kernel = _make_kernel(tile_i, I, ragged_i)
    vmem_limit = _vmem_limit_bytes(tile_o, tile_i, itemsize, vmem_cap)

    out = pl.pallas_call(
        kernel,
        out_shape=jax.ShapeDtypeStruct((n_o, tile_o), jnp.float32),
        grid_spec=pltpu.PrefetchScalarGridSpec(
            num_scalar_prefetch=0,
            grid=(n_o, n_k),
            in_specs=[
                pl.BlockSpec(memory_space=pltpu.MemorySpace.SMEM),      # ||x|| scalar
                pl.BlockSpec((1, tile_i), lambda o, k: (0, k)),         # x row chunk
                pl.BlockSpec((tile_o, tile_i), lambda o, k: (o, k)),    # param block
            ],
            out_specs=pl.BlockSpec((1, tile_o), lambda o, k: (o, 0)),   # lane-dense out
            scratch_shapes=[
                pltpu.VMEM((8, tile_o), jnp.float32),                   # dot accumulator
                pltpu.VMEM((8, tile_o), jnp.float32),                   # sum-sq accumulator
            ],
        ),
        compiler_params=pltpu.CompilerParams(
            dimension_semantics=("parallel", "arbitrary"),
            vmem_limit_bytes=vmem_limit,
        ),
    )(x_norm, x_row, param)

    return out.reshape(-1)[:O]


def _reference(p, x):
    p32 = p.astype(jnp.float32)
    x32 = x.astype(jnp.float32)
    dot = jnp.sum(p32 * x32[None, :], axis=1)
    p_norm = jnp.sqrt(jnp.sum(p32 * p32, axis=1))
    x_norm = jnp.sqrt(jnp.sum(x32 * x32))
    return dot / jnp.maximum(p_norm * x_norm, EPS)


if __name__ == "__main__":
    key = jax.random.PRNGKey(0)
    k_param, k_x, k_p2, k_x2, k_p3, k_x3 = jax.random.split(key, 6)

    # --- main case: matches the module's forward (single x vector) ----------
    input_size, output_size = 128, 256
    param_f32 = jax.random.normal(k_param, (output_size, input_size), dtype=jnp.float32)
    x_f32 = jax.random.normal(k_x, (input_size,), dtype=jnp.float32)

    o32 = mem_forward(param_f32, x_f32)
    jax.block_until_ready(o32)
    assert o32.shape == (output_size,)
    assert jnp.allclose(o32, _reference(param_f32, x_f32), atol=1e-3, rtol=1e-3)

    # bf16 param storage path (halves HBM traffic for the streamed matrix).
    param_bf16 = param_f32.astype(jnp.bfloat16)
    x_bf16 = x_f32.astype(jnp.bfloat16)
    o16 = mem_forward(param_bf16, x_bf16)
    jax.block_until_ready(o16)
    assert jnp.allclose(o16, _reference(param_bf16, x_bf16), atol=2e-2, rtol=2e-2)

    # --- multi-tile + ragged O (no wrapper-side param padding) --------------
    p2 = jax.random.normal(k_p2, (1000, 256), dtype=jnp.float32)
    x2 = jax.random.normal(k_x2, (256,), dtype=jnp.float32)
    o2 = mem_forward(p2, x2, tile_o=128)
    jax.block_until_ready(o2)
    assert o2.shape == (1000,)
    assert jnp.allclose(o2, _reference(p2, x2), atol=1e-3, rtol=1e-3)

    # --- ragged I (in-kernel lane masking, multi-step K reduction) ----------
    p3 = jax.random.normal(k_p3, (128, 200), dtype=jnp.float32)
    x3 = jax.random.normal(k_x3, (200,), dtype=jnp.float32)
    o3 = mem_forward(p3, x3, tile_i=128)
    jax.block_until_ready(o3)
    assert o3.shape == (128,)
    assert jnp.allclose(o3, _reference(p3, x3), atol=1e-3, rtol=1e-3)

    print("KERNEL_OK")
</pallas_src>

<mosaic_0001>
module attributes {stable_mosaic.version = 11 : i64} {
  func.func @kernel(%arg0: i32, %arg1: i32, %arg2: memref<1xf32, #tpu.memory_space<smem>>, %arg3: memref<1x128xf32, #tpu.memory_space<vmem>>, %arg4: memref<256x128xf32, #tpu.memory_space<vmem>>, %arg5: memref<1x256xf32, #tpu.memory_space<vmem>>, %arg6: memref<8x256xf32, #tpu.memory_space<vmem>>, %arg7: memref<8x256xf32, #tpu.memory_space<vmem>>) attributes {dimension_semantics = [#tpu.dimension_semantics<parallel>, #tpu.dimension_semantics<arbitrary>], iteration_bounds = array<i64: 1, 1>, scalar_prefetch = 0 : i64, scratch_operands = 2 : i64, tpu.core_type = #tpu.core_type<tc>, window_params = [{transform_indices = @transform_0, window_bounds = array<i64: 1>}, {transform_indices = @transform_1, window_bounds = array<i64: 1, 128>}, {transform_indices = @transform_2, window_bounds = array<i64: 256, 128>}, {transform_indices = @transform_3, window_bounds = array<i64: 1, 256>}]} {
    %c0_i32 = arith.constant 0 : i32
    %0 = arith.cmpi eq, %arg1, %c0_i32 : i32
    %1 = arith.extui %0 : i1 to i32
    %c0_i32_0 = arith.constant 0 : i32
    %2 = arith.cmpi ne, %1, %c0_i32_0 : i32
    scf.if %2 {
      %cst_16 = arith.constant 0.000000e+00 : f32
      %20 = vector.broadcast %cst_16 : f32 to vector<8x256xf32>
      %c0_17 = arith.constant 0 : index
      %c0_18 = arith.constant 0 : index
      %21 = vector.load %arg6[%c0_17, %c0_18] : memref<8x256xf32, #tpu.memory_space<vmem>>, vector<8x256xf32>
      tpu.vector_store %arg6[%c0_17, %c0_18], %20 {strides = array<i32>} : memref<8x256xf32, #tpu.memory_space<vmem>>, vector<8x256xf32>,
      %cst_19 = arith.constant 0.000000e+00 : f32
      %22 = vector.broadcast %cst_19 : f32 to vector<8x256xf32>
      %c0_20 = arith.constant 0 : index
      %c0_21 = arith.constant 0 : index
      %23 = vector.load %arg7[%c0_20, %c0_21] : memref<8x256xf32, #tpu.memory_space<vmem>>, vector<8x256xf32>
      tpu.vector_store %arg7[%c0_20, %c0_21], %22 {strides = array<i32>} : memref<8x256xf32, #tpu.memory_space<vmem>>, vector<8x256xf32>,
    } else {
    }
    %c0 = arith.constant 0 : index
    %c0_1 = arith.constant 0 : index
    %3 = vector.load %arg4[%c0, %c0_1] : memref<256x128xf32, #tpu.memory_space<vmem>>, vector<256x128xf32>
    %c0_2 = arith.constant 0 : index
    %c0_3 = arith.constant 0 : index
    %4 = vector.load %arg3[%c0_2, %c0_3] : memref<1x128xf32, #tpu.memory_space<vmem>>, vector<1x128xf32>
    %5 = vector.shape_cast %4 : vector<1x128xf32> to vector<1x128xf32>
    %6 = vector.broadcast %5 : vector<1x128xf32> to vector<8x128xf32>
    %cst = arith.constant 1.000000e+00 : f32
    %7 = vector.broadcast %cst : f32 to vector<8x128xf32>
    %c0_4 = arith.constant 0 : index
    %c0_5 = arith.constant 0 : index
    %8 = vector.load %arg6[%c0_4, %c0_5] : memref<8x256xf32, #tpu.memory_space<vmem>>, vector<8x256xf32>
    %cst_6 = arith.constant dense<0.000000e+00> : vector<8x256xf32>
    %9 = tpu.matmul %6, %3, %cst_6 {dimension_numbers = #tpu.dot_dimension_numbers<[1], [1], [0], [0], [0, 0, 1, 0], [], []>} : vector<8x128xf32>, vector<256x128xf32>, vector<8x256xf32> -> vector<8x256xf32>
    %10 = arith.addf %8, %9 : vector<8x256xf32>
    %c0_7 = arith.constant 0 : index
    %c0_8 = arith.constant 0 : index
    %11 = vector.load %arg6[%c0_7, %c0_8] : memref<8x256xf32, #tpu.memory_space<vmem>>, vector<8x256xf32>
    tpu.vector_store %arg6[%c0_7, %c0_8], %10 {strides = array<i32>} : memref<8x256xf32, #tpu.memory_space<vmem>>, vector<8x256xf32>,
    %c0_9 = arith.constant 0 : index
    %c0_10 = arith.constant 0 : index
    %12 = vector.load %arg7[%c0_9, %c0_10] : memref<8x256xf32, #tpu.memory_space<vmem>>, vector<8x256xf32>
    %13 = arith.mulf %3, %3 : vector<256x128xf32>
    %cst_11 = arith.constant dense<0.000000e+00> : vector<8x256xf32>
    %14 = tpu.matmul %7, %13, %cst_11 {dimension_numbers = #tpu.dot_dimension_numbers<[1], [1], [0], [0], [0, 0, 1, 0], [], []>} : vector<8x128xf32>, vector<256x128xf32>, vector<8x256xf32> -> vector<8x256xf32>
    %15 = arith.addf %12, %14 : vector<8x256xf32>
    %c0_12 = arith.constant 0 : index
    %c0_13 = arith.constant 0 : index
    %16 = vector.load %arg7[%c0_12, %c0_13] : memref<8x256xf32, #tpu.memory_space<vmem>>, vector<8x256xf32>
    tpu.vector_store %arg7[%c0_12, %c0_13], %15 {strides = array<i32>} : memref<8x256xf32, #tpu.memory_space<vmem>>, vector<8x256xf32>,
    %c0_i32_14 = arith.constant 0 : i32
    %17 = arith.cmpi eq, %arg1, %c0_i32_14 : i32
    %18 = arith.extui %17 : i1 to i32
    %c0_i32_15 = arith.constant 0 : i32
    %19 = arith.cmpi ne, %18, %c0_i32_15 : i32
    scf.if %19 {
      %c0_16 = arith.constant 0 : index
      %20 = memref.load %arg2[%c0_16] : memref<1xf32, #tpu.memory_space<smem>>
      %c0_17 = arith.constant 0 : index
      %c0_18 = arith.constant 0 : index
      %21 = vector.load %arg7[%c0_17, %c0_18] : memref<8x256xf32, #tpu.memory_space<vmem>>, vector<1x256xf32>
      %22 = math.sqrt %21 : vector<1x256xf32>
      %23 = vector.broadcast %20 : f32 to vector<1x256xf32>
      %24 = arith.mulf %22, %23 : vector<1x256xf32>
      %cst_19 = arith.constant 9.99999993E-9 : f32
      %25 = vector.broadcast %cst_19 : f32 to vector<1x256xf32>
      %26 = arith.maximumf %24, %25 : vector<1x256xf32>
      %c0_20 = arith.constant 0 : index
      %c0_21 = arith.constant 0 : index
      %27 = vector.load %arg6[%c0_20, %c0_21] : memref<8x256xf32, #tpu.memory_space<vmem>>, vector<1x256xf32>
      %28 = arith.divf %27, %26 : vector<1x256xf32>
      %c0_22 = arith.constant 0 : index
      %c0_23 = arith.constant 0 : index
      %29 = vector.load %arg5[%c0_22, %c0_23] : memref<1x256xf32, #tpu.memory_space<vmem>>, vector<1x256xf32>
      tpu.vector_store %arg5[%c0_22, %c0_23], %28 {strides = array<i32>} : memref<1x256xf32, #tpu.memory_space<vmem>>, vector<1x256xf32>,
    } else {
    }
    return
  }
  func.func @transform_0(%arg0: i32, %arg1: i32) -> i32 {
    %c0_i32 = arith.constant 0 : i32
    %c0_i32_0 = arith.constant 0 : i32
    return %c0_i32 : i32
  }
  func.func @transform_1(%arg0: i32, %arg1: i32) -> (i32, i32) {
    %c0_i32 = arith.constant 0 : i32
    %c0_i32_0 = arith.constant 0 : i32
    return %c0_i32, %arg1 : i32, i32
  }
  func.func @transform_2(%arg0: i32, %arg1: i32) -> (i32, i32) {
    %c0_i32 = arith.constant 0 : i32
    return %arg0, %arg1 : i32, i32
  }
  func.func @transform_3(%arg0: i32, %arg1: i32) -> (i32, i32) {
    %c0_i32 = arith.constant 0 : i32
    %c0_i32_0 = arith.constant 0 : i32
    return %arg0, %c0_i32 : i32, i32
  }
}

</mosaic_0001>

<llo_original>
// kernel: tpu_custom_call.1
$region0: #{tpu_custom_call.1}
  #allocation0 [shape = 'u32[]', space=smem, size = 0x4, offset = 0x4, fixed_abs, tag = 'smem constant byte address 0x4 - core index']
  #allocation1 [shape = 'u32[144,128]{1,0:T(1,128)}', space=vmem, size = 0x12000, scoped, tag = 'internal scratch']
  #allocation2 [shape = 'f32[8,256]{1,0:T(8,128)}', space=vmem, size = 0x2000, scoped, tag = 'scratch operand']
  #allocation3 [shape = 'f32[8,256]{1,0:T(8,128)}', space=vmem, size = 0x2000, scoped, tag = 'scratch operand']
  #allocation4 [shape = 'f32[1]{0:T(128)S(6)}', space=smem, size = 0x200, scoped, tag = 'scoped memory for tpu_custom_call.1']
  %s0 = inlined_call_operand.<no memory space> [shape: f32[1], index: 0, kind: input, shape index: {}]
  %s1 = inlined_call_operand.vmem [shape: f32[1,128], index: 1, kind: input, shape index: {}]
  %s2 = inlined_call_operand.hbm [shape: f32[256,128], index: 2, kind: input, shape index: {}]
  %s3 = inlined_call_operand.hbm [shape: f32[1,256], index: 3, kind: output, shape index: {}]
  %s4 = sld [smem:[#allocation0]]
  $region34: #{tpu_custom_call.1} parent=0
    _
  %s6 = ssub.s32 1, %s4
  %s7 = scalar_select 0, %s6, %s4
  %8 = sst [smem:[#allocation4]] %s0
  $region1: #{tpu_custom_call.1} parent=0
    #allocation5 [shape = 'u8[131072]{0}', space=vmem, size = 0x20000, scoped, tag = 'input window, operand 2, single buffered']
    #allocation6 [shape = 's32[1]{0}', space=sflag, size = 0x4, scoped, tag = 'scoped memory for tpu_custom_call.1']
    #allocation7 [shape = 's32[1]{0}', space=sflag, size = 0x4, scoped, tag = 'scoped memory for tpu_custom_call.1']
    #allocation8 [shape = 'u8[1024]{0}', space=vmem, size = 0x400, scoped, tag = 'output window, operand 0, single buffered']
    %9 = vsyncpa [#allocation6], 0
    %10 = vsyncpa [#allocation7], 0
    // Predicated region
    $region2: #{tpu_custom_call.1} parent=1 // pred_check
      _
    $region3: #{tpu_custom_call.1} parent=1 // pred_check_branch
      %12 = sbr.rel (0) target = $region5
    $region4: #{tpu_custom_call.1} parent=1 // pred_region
      _
    $region5: #{tpu_custom_call.1} parent=1 // pred_fallthru
      _
    // Predicated region
    $region6: #{tpu_custom_call.1} parent=1 // pred_check
      _
    $region7: #{tpu_custom_call.1} parent=1 // pred_check_branch
      %14 = sbr.rel (0) target = $region9
    $region8: #{tpu_custom_call.1} parent=1 // pred_region
      _
    $region9: #{tpu_custom_call.1} parent=1 // pred_fallthru
      _
    // Predicated region
    $region10: #{tpu_custom_call.1} parent=1 // pred_check
      _
    $region11: #{tpu_custom_call.1} parent=1 // pred_check_branch
      %16 = sbr.rel (0) target = $region13
    $region12: #{tpu_custom_call.1} parent=1 // pred_region
      %s18 = ssub.s32 4096, 4096
      %19 = vsyncadd [#allocation6], %s18
      %s20 = sshll.u32 [#allocation5], 4
      %s21 = int_to_ptr.vmem [resolvable:$true] %s20
      %26 = dma.hbm_to_vmem [thread:$0]  %s2, 4096, %s21, [#allocation6], 128, 128, 8
    $region13: #{tpu_custom_call.1} parent=1 // pred_fallthru
      _
    // Predicated region
    $region14: #{tpu_custom_call.1} parent=1 // pred_check
      _
    $region15: #{tpu_custom_call.1} parent=1 // pred_check_branch
      %28 = sbr.rel (0) target = $region17
    $region16: #{tpu_custom_call.1} parent=1 // pred_region
      %29 = dma.done [#allocation6], 4096
    $region17: #{tpu_custom_call.1} parent=1 // pred_fallthru
      _
    %p30 = scmp.eq.s32.totalorder 0, 0
    // Predicated region
    $region18: #{tpu_custom_call.1} parent=1 // pred_check
      %p31 = pneg %p30
    $region19: #{tpu_custom_call.1} parent=1 // pred_check_branch
      %33 = sbr.rel (%p31) target = $region21
    $region20: #{tpu_custom_call.1} parent=1 // pred_region
      %34 = vst [vmem:[#allocation2] sm:$0xff] 0.0
      %35 = vst [vmem:[#allocation2 + $0x8] sm:$0xff] 0.0
      %36 = vst [vmem:[#allocation3] sm:$0xff] 0.0
      %37 = vst [vmem:[#allocation3 + $0x8] sm:$0xff] 0.0
    $region21: #{tpu_custom_call.1} parent=1 // pred_fallthru
      _
    %v38 = vld [vmem:[#allocation5] sm:$0xff]
    %v39 = vld [vmem:[#allocation5 + $0x8] sm:$0xff]
    %v40 = vld [vmem:[#allocation5 + $0x10] sm:$0xff]
    %v41 = vld [vmem:[#allocation5 + $0x18] sm:$0xff]
    %v42 = vld [vmem:[#allocation5 + $0x20] sm:$0xff]
    %v43 = vld [vmem:[#allocation5 + $0x28] sm:$0xff]
    %v44 = vld [vmem:[#allocation5 + $0x30] sm:$0xff]
    %v45 = vld [vmem:[#allocation5 + $0x38] sm:$0xff]
    %v46 = vld [vmem:[#allocation5 + $0x40] sm:$0xff]
    %v47 = vld [vmem:[#allocation5 + $0x48] sm:$0xff]
    %v48 = vld [vmem:[#allocation5 + $0x50] sm:$0xff]
    %v49 = vld [vmem:[#allocation5 + $0x58] sm:$0xff]
    %v50 = vld [vmem:[#allocation5 + $0x60] sm:$0xff]
    %v51 = vld [vmem:[#allocation5 + $0x68] sm:$0xff]
    %v52 = vld [vmem:[#allocation5 + $0x70] sm:$0xff]
    %v53 = vld [vmem:[#allocation5 + $0x78] sm:$0xff]
    %v54 = vld [vmem:[#allocation5 + $0x80] sm:$0xff]
    %v55 = vld [vmem:[#allocation5 + $0x88] sm:$0xff]
    %v56 = vld [vmem:[#allocation5 + $0x90] sm:$0xff]
    %v57 = vld [vmem:[#allocation5 + $0x98] sm:$0xff]
    %v58 = vld [vmem:[#allocation5 + $0xa0] sm:$0xff]
    %v59 = vld [vmem:[#allocation5 + $0xa8] sm:$0xff]
    %v60 = vld [vmem:[#allocation5 + $0xb0] sm:$0xff]
    %v61 = vld [vmem:[#allocation5 + $0xb8] sm:$0xff]
    %v62 = vld [vmem:[#allocation5 + $0xc0] sm:$0xff]
    %v63 = vld [vmem:[#allocation5 + $0xc8] sm:$0xff]
    %v64 = vld [vmem:[#allocation5 + $0xd0] sm:$0xff]
    %v65 = vld [vmem:[#allocation5 + $0xd8] sm:$0xff]
    %v66 = vld [vmem:[#allocation5 + $0xe0] sm:$0xff]
    %v67 = vld [vmem:[#allocation5 + $0xe8] sm:$0xff]
    %v68 = vld [vmem:[#allocation5 + $0xf0] sm:$0xff]
    %v69 = vld [vmem:[#allocation5 + $0xf8] sm:$0xff]
    %v70 = vld [vmem:[%s1] sm:$0x1]
    %v72 = vlaneseq
    %v73 = vshrl.u32 %v72, 7
    %v74 = vsub.s32 0, %v73
    %v75 = vrot.slane %v70, %v74
    %v77 = vld [vmem:[#allocation2] sm:$0xff]
    %v78 = vld [vmem:[#allocation2 + $0x8] sm:$0xff]
    %79 = vmatprep.subr.mxu0 0.0
    %80 = vmatpush1.xpose.msra.mxu0 %v38
    %81 = vmatprep.subr.mxu0 0.0
    %82 = vmatpush1.xpose.msra.mxu0 %v39
    %83 = vmatprep.subr.mxu0 0.0
    %84 = vmatpush1.xpose.msra.mxu0 %v40
    %85 = vmatprep.subr.mxu0 0.0
    %86 = vmatpush1.xpose.msra.mxu0 %v41
    %87 = vmatprep.subr.mxu0 0.0
    %88 = vmatpush1.xpose.msra.mxu0 %v42
    %89 = vmatprep.subr.mxu0 0.0
    %90 = vmatpush1.xpose.msra.mxu0 %v43
    %91 = vmatprep.subr.mxu0 0.0
    %92 = vmatpush1.xpose.msra.mxu0 %v44
    %93 = vmatprep.subr.mxu0 0.0
    %94 = vmatpush1.xpose.msra.mxu0 %v45
    %95 = vmatprep.subr.mxu0 0.0
    %96 = vmatpush1.xpose.msra.mxu0 %v46
    %97 = vmatprep.subr.mxu0 0.0
    %98 = vmatpush1.xpose.msra.mxu0 %v47
    %99 = vmatprep.subr.mxu0 0.0
    %100 = vmatpush1.xpose.msra.mxu0 %v48
    %101 = vmatprep.subr.mxu0 0.0
    %102 = vmatpush1.xpose.msra.mxu0 %v49
    %103 = vmatprep.subr.mxu0 0.0
    %104 = vmatpush1.xpose.msra.mxu0 %v50
    %105 = vmatprep.subr.mxu0 0.0
    %106 = vmatpush1.xpose.msra.mxu0 %v51
    %107 = vmatprep.subr.mxu0 0.0
    %108 = vmatpush1.xpose.msra.mxu0 %v52
    %109 = vmatprep.subr.mxu0 0.0
    %110 = vmatpush1.xpose.msra.mxu0 %v53
    %111 = vmatprep.subr.mxu0 0.0
    %112 = vmatpush1.xpose.msra.mxu0 %v54
    %113 = vmatprep.subr.mxu0 0.0
    %114 = vmatpush1.xpose.msra.mxu0 %v55
    %115 = vmatprep.subr.mxu0 0.0
    %116 = vmatpush1.xpose.msra.mxu0 %v56
    %117 = vmatprep.subr.mxu0 0.0
    %118 = vmatpush1.xpose.msra.mxu0 %v57
    %119 = vmatprep.subr.mxu0 0.0
    %120 = vmatpush1.xpose.msra.mxu0 %v58
    %121 = vmatprep.subr.mxu0 0.0
    %122 = vmatpush1.xpose.msra.mxu0 %v59
    %123 = vmatprep.subr.mxu0 0.0
    %124 = vmatpush1.xpose.msra.mxu0 %v60
    %125 = vmatprep.subr.mxu0 0.0
    %126 = vmatpush1.xpose.msra.mxu0 %v61
    %127 = vmatprep.subr.mxu0 0.0
    %128 = vmatpush1.xpose.msra.mxu0 %v62
    %129 = vmatprep.subr.mxu0 0.0
    %130 = vmatpush1.xpose.msra.mxu0 %v63
    %131 = vmatprep.subr.mxu0 0.0
    %132 = vmatpush1.xpose.msra.mxu0 %v64
    %133 = vmatprep.subr.mxu0 0.0
    %134 = vmatpush1.xpose.msra.mxu0 %v65
    %135 = vmatprep.subr.mxu0 0.0
    %136 = vmatpush1.xpose.msra.mxu0 %v66
    %137 = vmatprep.subr.mxu0 0.0
    %138 = vmatpush1.xpose.msra.mxu0 %v67
    %139 = vmatprep.subr.mxu0 0.0
    %140 = vmatpush1.xpose.msra.mxu0 %v68
    %141 = vmatprep.subr.mxu0 0.0
    %142 = vmatpush1.xpose.msra.mxu0 %v69
    %143 = vmatprep.mubr.f32.mxu0 0.0
    %144 = vmatmul.mubr.f32.gmra.mrb[0].mxu0 %v75
    %v145 = vpop.f32.mrb[0].mxu0
    %v146 = vadd.f32 0.0, %v145
    %v147 = vpop.f32.mrb[0].mxu0
    %v148 = vadd.f32 0.0, %v147
    %149 = vdwg.mxu0
    %v150 = vadd.f32 %v77, %v146
    %v151 = vadd.f32 %v78, %v148
    %152 = vst [vmem:[#allocation2] sm:$0xff] %v150
    %153 = vst [vmem:[#allocation2 + $0x8] sm:$0xff] %v151
    %v154 = vld [vmem:[#allocation3] sm:$0xff]
    %v155 = vld [vmem:[#allocation3 + $0x8] sm:$0xff]
    %v156 = vmul.f32 %v38, %v38
    %v157 = vmul.f32 %v39, %v39
    %v158 = vmul.f32 %v40, %v40
    %v159 = vmul.f32 %v41, %v41
    %v160 = vmul.f32 %v42, %v42
    %v161 = vmul.f32 %v43, %v43
    %v162 = vmul.f32 %v44, %v44
    %v163 = vmul.f32 %v45, %v45
    %v164 = vmul.f32 %v46, %v46
    %v165 = vmul.f32 %v47, %v47
    %v166 = vmul.f32 %v48, %v48
    %v167 = vmul.f32 %v49, %v49
    %v168 = vmul.f32 %v50, %v50
    %v169 = vmul.f32 %v51, %v51
    %v170 = vmul.f32 %v52, %v52
    %v171 = vmul.f32 %v53, %v53
    %v172 = vmul.f32 %v54, %v54
    %v173 = vmul.f32 %v55, %v55
    %v174 = vmul.f32 %v56, %v56
    %v175 = vmul.f32 %v57, %v57
    %v176 = vmul.f32 %v58, %v58
    %v177 = vmul.f32 %v59, %v59
    %v178 = vmul.f32 %v60, %v60
    %v179 = vmul.f32 %v61, %v61
    %v180 = vmul.f32 %v62, %v62
    %v181 = vmul.f32 %v63, %v63
    %v182 = vmul.f32 %v64, %v64
    %v183 = vmul.f32 %v65, %v65
    %v184 = vmul.f32 %v66, %v66
    %v185 = vmul.f32 %v67, %v67
    %v186 = vmul.f32 %v68, %v68
    %v187 = vmul.f32 %v69, %v69
    %188 = vmatprep.subr.mxu0 0.0
    %189 = vmatpush1.xpose.msra.mxu0 %v156
    %190 = vmatprep.subr.mxu0 0.0
    %191 = vmatpush1.xpose.msra.mxu0 %v157
    %192 = vmatprep.subr.mxu0 0.0
    %193 = vmatpush1.xpose.msra.mxu0 %v158
    %194 = vmatprep.subr.mxu0 0.0
    %195 = vmatpush1.xpose.msra.mxu0 %v159
    %196 = vmatprep.subr.mxu0 0.0
    %197 = vmatpush1.xpose.msra.mxu0 %v160
    %198 = vmatprep.subr.mxu0 0.0
    %199 = vmatpush1.xpose.msra.mxu0 %v161
    %200 = vmatprep.subr.mxu0 0.0
    %201 = vmatpush1.xpose.msra.mxu0 %v162
    %202 = vmatprep.subr.mxu0 0.0
    %203 = vmatpush1.xpose.msra.mxu0 %v163
    %204 = vmatprep.subr.mxu0 0.0
    %205 = vmatpush1.xpose.msra.mxu0 %v164
    %206 = vmatprep.subr.mxu0 0.0
    %207 = vmatpush1.xpose.msra.mxu0 %v165
    %208 = vmatprep.subr.mxu0 0.0
    %209 = vmatpush1.xpose.msra.mxu0 %v166
    %210 = vmatprep.subr.mxu0 0.0
    %211 = vmatpush1.xpose.msra.mxu0 %v167
    %212 = vmatprep.subr.mxu0 0.0
    %213 = vmatpush1.xpose.msra.mxu0 %v168
    %214 = vmatprep.subr.mxu0 0.0
    %215 = vmatpush1.xpose.msra.mxu0 %v169
    %216 = vmatprep.subr.mxu0 0.0
    %217 = vmatpush1.xpose.msra.mxu0 %v170
    %218 = vmatprep.subr.mxu0 0.0
    %219 = vmatpush1.xpose.msra.mxu0 %v171
    %220 = vmatprep.subr.mxu0 0.0
    %221 = vmatpush1.xpose.msra.mxu0 %v172
    %222 = vmatprep.subr.mxu0 0.0
    %223 = vmatpush1.xpose.msra.mxu0 %v173
    %224 = vmatprep.subr.mxu0 0.0
    %225 = vmatpush1.xpose.msra.mxu0 %v174
    %226 = vmatprep.subr.mxu0 0.0
    %227 = vmatpush1.xpose.msra.mxu0 %v175
    %228 = vmatprep.subr.mxu0 0.0
    %229 = vmatpush1.xpose.msra.mxu0 %v176
    %230 = vmatprep.subr.mxu0 0.0
    %231 = vmatpush1.xpose.msra.mxu0 %v177
    %232 = vmatprep.subr.mxu0 0.0
    %233 = vmatpush1.xpose.msra.mxu0 %v178
    %234 = vmatprep.subr.mxu0 0.0
    %235 = vmatpush1.xpose.msra.mxu0 %v179
    %236 = vmatprep.subr.mxu0 0.0
    %237 = vmatpush1.xpose.msra.mxu0 %v180
    %238 = vmatprep.subr.mxu0 0.0
    %239 = vmatpush1.xpose.msra.mxu0 %v181
    %240 = vmatprep.subr.mxu0 0.0
    %241 = vmatpush1.xpose.msra.mxu0 %v182
    %242 = vmatprep.subr.mxu0 0.0
    %243 = vmatpush1.xpose.msra.mxu0 %v183
    %244 = vmatprep.subr.mxu0 0.0
    %245 = vmatpush1.xpose.msra.mxu0 %v184
    %246 = vmatprep.subr.mxu0 0.0
    %247 = vmatpush1.xpose.msra.mxu0 %v185
    %248 = vmatprep.subr.mxu0 0.0
    %249 = vmatpush1.xpose.msra.mxu0 %v186
    %250 = vmatprep.subr.mxu0 0.0
    %251 = vmatpush1.xpose.msra.mxu0 %v187
    %252 = vmatprep.mubr.f32.mxu0 0.0
    %253 = vmatmul.mubr.f32.gmra.mrb[0].mxu0 1.0
    %v254 = vpop.f32.mrb[0].mxu0
    %v255 = vadd.f32 0.0, %v254
    %v256 = vpop.f32.mrb[0].mxu0
    %v257 = vadd.f32 0.0, %v256
    %258 = vdwg.mxu0
    %v259 = vadd.f32 %v154, %v255
    %v260 = vadd.f32 %v155, %v257
    %261 = vst [vmem:[#allocation3] sm:$0xff] %v259
    %262 = vst [vmem:[#allocation3 + $0x8] sm:$0xff] %v260
    // Predicated region
    $region22: #{tpu_custom_call.1} parent=1 // pred_check
      %p263 = pneg %p30
    $region23: #{tpu_custom_call.1} parent=1 // pred_check_branch
      %265 = sbr.rel (%p263) target = $region25
    $region24: #{tpu_custom_call.1} parent=1 // pred_region
      %s266 = sld [smem:[#allocation4]]
      %v267 = vld [vmem:[#allocation3] ss:$8 sm:$0x3]
      %v268 = vrsqrt.pop %v267
      %v269 = vmul.f32 %v267, %v268
      %vm270 = vcmp.eq.f32.partialorder %v267, inf
      %v271 = vsel %vm270, %v267, %v269
      %vm272 = vcmp.eq.f32.partialorder %v267, 0.0
      %v273 = vand.u32 %v267, 2147483648
      %v274 = vsel %vm272, %v273, %v271
      %v275 = vstv %s266
      %v276 = vmul.f32 %v274, %v275
      %v277 = vmax.f32 %v276, 1e-08
      %v278 = vld [vmem:[#allocation2] ss:$8 sm:$0x3]
      %v279 = vrcp.pop %v277
      %v280 = vmul.f32 %v278, %v279
      %v281 = vlaneseq
      %vm282 = vcmp.ge.s32.totalorder %v281, 0
      %vm283 = vcmp.lt.s32.totalorder %v281, 256
      %vm284 = vmand %vm282, %vm283
      %285 = vst.msk [vmem:[#allocation8] sm:$0x3] %vm284, %v280
    $region25: #{tpu_custom_call.1} parent=1 // pred_fallthru
      _
    // Predicated region
    $region26: #{tpu_custom_call.1} parent=1 // pred_check
      _
    $region27: #{tpu_custom_call.1} parent=1 // pred_check_branch
      %287 = sbr.rel (0) target = $region29
    $region28: #{tpu_custom_call.1} parent=1 // pred_region
      %s289 = ssub.s32 32, 32
      %290 = vsyncadd [#allocation7], %s289
      %s292 = sshll.u32 [#allocation8], 4
      %s293 = int_to_ptr.vmem [resolvable:$true] %s292
      %295 = dma.vmem_to_hbm [thread:$0]  %s293, 32, %s3, [#allocation7]
    $region29: #{tpu_custom_call.1} parent=1 // pred_fallthru
      _
    // Predicated region
    $region30: #{tpu_custom_call.1} parent=1 // pred_check
      _
    $region31: #{tpu_custom_call.1} parent=1 // pred_check_branch
      %297 = sbr.rel (0) target = $region33
    $region32: #{tpu_custom_call.1} parent=1 // pred_region
      %298 = dma.done [#allocation7], 32
    $region33: #{tpu_custom_call.1} parent=1 // pred_fallthru
      _
    %299 = vsyncpa [#allocation6], 1
    %300 = vsyncpa [#allocation7], 1

</llo_original>
